<compile_context>
chip_gen: v7x
topology: tpu7x:2x2x1
jax: 0.10.0
libtpu: 0.0.40
codegen_flags: <defaults>
</compile_context>

<pallas_src>
import jax
import jax.numpy as jnp
from jax.experimental import pallas as pl
from jax.experimental.pallas import tpu as pltpu


def _round_up(x: int, m: int) -> int:
    return ((x + m - 1) // m) * m


def _mlp_kernel(x_ref, w1_ref, b1_ref, w2_ref, b2_ref, o_ref):
    # fc1 + ReLU: bf16 operands, f32 MXU accumulation, f32 bias add.
    h = jnp.dot(x_ref[...], w1_ref[...], preferred_element_type=jnp.float32)
    h = jnp.maximum(h + b1_ref[...], 0.0)          # b1 is (1, 256), broadcasts
    # fc2 + tanh: recast hidden to bf16 for the MXU, accumulate in f32.
    y = jnp.dot(h.astype(jnp.bfloat16), w2_ref[...],
                preferred_element_type=jnp.float32)
    y = y + b2_ref[...]                            # b2 is (1, N_pad), broadcasts
    o_ref[...] = jnp.tanh(y).astype(o_ref.dtype)


def tictactoe_forward(x, w1, b1, w2, b2, *, block_b: int = 1024):
    """Fused MLP forward.

    x : (B, in)          float
    w1: (in, 256)        float   (already transposed from PyTorch layout)
    b1: (256,)           float
    w2: (256, out)       float   (already transposed)
    b2: (out,)           float
    returns (B, out) float32
    """
    B, K = x.shape
    H = w1.shape[1]
    N = w2.shape[1]

    # Lane-dense output: pad fc2 columns (zeros) to a multiple of 128.
    N_pad = _round_up(N, 128)
    w2_p = jnp.pad(w2, ((0, 0), (0, N_pad - N)))
    b2_p = jnp.pad(b2, (0, N_pad - N))

    # Batch tiling: tm is a multiple of 8; small batches use one grid step,
    # large batches are pipelined in block_b-row tiles (comfortably inside
    # v7x's 64 MiB VMEM, even more so on v5e/v6e with 128 MiB).
    tm = min(block_b, _round_up(B, 8))
    B_pad = _round_up(B, tm)
    x_p = jnp.pad(x, ((0, B_pad - B), (0, 0)))

    # bf16 MXU inputs (board values -1/0/+1 are exact in bf16); biases stay f32.
    x_bf = x_p.astype(jnp.bfloat16)
    w1_bf = w1.astype(jnp.bfloat16)
    w2_bf = w2_p.astype(jnp.bfloat16)
    b1_2d = b1.reshape(1, H).astype(jnp.float32)
    b2_2d = b2_p.reshape(1, N_pad).astype(jnp.float32)

    grid = (B_pad // tm,)

    flops = 2 * B_pad * K * H + 2 * B_pad * H * N_pad
    bytes_accessed = (x_bf.size * 2 + w1_bf.size * 2 + w2_bf.size * 2
                      + b1_2d.size * 4 + b2_2d.size * 4
                      + B_pad * N_pad * 4)

    out = pl.pallas_call(
        _mlp_kernel,
        out_shape=jax.ShapeDtypeStruct((B_pad, N_pad), jnp.float32),
        grid=grid,
        in_specs=[
            pl.BlockSpec((tm, K), lambda i: (i, 0)),      # x tile (pipelined)
            pl.BlockSpec((K, H), lambda i: (0, 0)),       # w1 resident in VMEM
            pl.BlockSpec((1, H), lambda i: (0, 0)),       # b1 resident
            pl.BlockSpec((H, N_pad), lambda i: (0, 0)),   # w2 resident
            pl.BlockSpec((1, N_pad), lambda i: (0, 0)),   # b2 resident
        ],
        out_specs=pl.BlockSpec((tm, N_pad), lambda i: (i, 0)),
        compiler_params=pltpu.CompilerParams(
            dimension_semantics=("parallel",),
        ),
        cost_estimate=pl.CostEstimate(
            flops=flops,
            transcendentals=B_pad * N_pad,     # tanh on EUP
            bytes_accessed=bytes_accessed,
        ),
    )(x_bf, w1_bf, b1_2d, w2_bf, b2_2d)

    # Drop batch padding and the zero-padded (tanh(0)=0) output columns.
    return out[:B, :N]


def _reference_forward(x, w1, b1, w2, b2):
    h = jnp.maximum(x @ w1 + b1, 0.0)
    return jnp.tanh(h @ w2 + b2)


if __name__ == "__main__":
    # Tic-tac-toe board: 9 squares in, 9 move scores out.
    input_size, hidden, output_size = 9, 256, 9
    batch = 8

    key = jax.random.PRNGKey(0)
    k_x, k_w1, k_b1, k_w2, k_b2 = jax.random.split(key, 5)

    # Deterministic init mimicking nn.Linear default: U(-1/sqrt(fan_in), 1/sqrt(fan_in)).
    bound1 = 1.0 / jnp.sqrt(jnp.float32(input_size))
    bound2 = 1.0 / jnp.sqrt(jnp.float32(hidden))
    # Stored already transposed to (in_features, out_features).
    w1 = jax.random.uniform(k_w1, (input_size, hidden), jnp.float32, -bound1, bound1)
    b1 = jax.random.uniform(k_b1, (hidden,), jnp.float32, -bound1, bound1)
    w2 = jax.random.uniform(k_w2, (hidden, output_size), jnp.float32, -bound2, bound2)
    b2 = jax.random.uniform(k_b2, (output_size,), jnp.float32, -bound2, bound2)

    # Board encoding: -1 / 0 / +1 per square (exact in bf16).
    x = jax.random.randint(k_x, (batch, input_size), -1, 2).astype(jnp.float32)

    out = tictactoe_forward(x, w1, b1, w2, b2)
    out = jax.block_until_ready(out)

    ref = _reference_forward(x, w1, b1, w2, b2)
    assert out.shape == (batch, output_size)
    # bf16 MXU inputs with f32 accumulation -> relaxed tolerance vs pure-f32 ref.
    assert jnp.allclose(out, ref, atol=2e-2, rtol=2e-2)

    print("KERNEL_OK")
</pallas_src>

<mosaic_0001>
module attributes {stable_mosaic.version = 11 : i64} {
  func.func @_mlp_kernel(%arg0: i32, %arg1: memref<8x9xbf16, #tpu.memory_space<vmem>>, %arg2: memref<9x256xbf16, #tpu.memory_space<vmem>>, %arg3: memref<1x256xf32, #tpu.memory_space<vmem>>, %arg4: memref<256x128xbf16, #tpu.memory_space<vmem>>, %arg5: memref<1x128xf32, #tpu.memory_space<vmem>>, %arg6: memref<8x128xf32, #tpu.memory_space<vmem>>) attributes {dimension_semantics = [#tpu.dimension_semantics<parallel>], iteration_bounds = array<i64: 1>, scalar_prefetch = 0 : i64, scratch_operands = 0 : i64, tpu.core_type = #tpu.core_type<tc>, window_params = [{transform_indices = @transform_0, window_bounds = array<i64: 8, 9>}, {pipeline_mode = #tpu.pipeline_mode<synchronous>, transform_indices = @transform_1, window_bounds = array<i64: 9, 256>}, {pipeline_mode = #tpu.pipeline_mode<synchronous>, transform_indices = @transform_2, window_bounds = array<i64: 1, 256>}, {pipeline_mode = #tpu.pipeline_mode<synchronous>, transform_indices = @transform_3, window_bounds = array<i64: 256, 128>}, {pipeline_mode = #tpu.pipeline_mode<synchronous>, transform_indices = @transform_4, window_bounds = array<i64: 1, 128>}, {transform_indices = @transform_5, window_bounds = array<i64: 8, 128>}]} {
    %c0 = arith.constant 0 : index
    %c0_0 = arith.constant 0 : index
    %0 = vector.load %arg1[%c0, %c0_0] : memref<8x9xbf16, #tpu.memory_space<vmem>>, vector<8x9xbf16>
    %c0_1 = arith.constant 0 : index
    %c0_2 = arith.constant 0 : index
    %1 = vector.load %arg2[%c0_1, %c0_2] : memref<9x256xbf16, #tpu.memory_space<vmem>>, vector<9x256xbf16>
    %cst = arith.constant dense<0.000000e+00> : vector<8x256xf32>
    %2 = tpu.matmul %0, %1, %cst {dimension_numbers = #tpu.dot_dimension_numbers<[1], [0], [0], [1], [0, 0, 1, 1], [], []>} : vector<8x9xbf16>, vector<9x256xbf16>, vector<8x256xf32> -> vector<8x256xf32>
    %c0_3 = arith.constant 0 : index
    %c0_4 = arith.constant 0 : index
    %3 = vector.load %arg3[%c0_3, %c0_4] : memref<1x256xf32, #tpu.memory_space<vmem>>, vector<1x256xf32>
    %4 = vector.broadcast %3 : vector<1x256xf32> to vector<8x256xf32>
    %5 = arith.addf %2, %4 : vector<8x256xf32>
    %cst_5 = arith.constant 0.000000e+00 : f32
    %6 = vector.broadcast %cst_5 : f32 to vector<8x256xf32>
    %7 = arith.maximumf %5, %6 : vector<8x256xf32>
    %8 = arith.truncf %7 : vector<8x256xf32> to vector<8x256xbf16>
    %c0_6 = arith.constant 0 : index
    %c0_7 = arith.constant 0 : index
    %9 = vector.load %arg4[%c0_6, %c0_7] : memref<256x128xbf16, #tpu.memory_space<vmem>>, vector<256x128xbf16>
    %cst_8 = arith.constant dense<0.000000e+00> : vector<8x128xf32>
    %10 = tpu.matmul %8, %9, %cst_8 {dimension_numbers = #tpu.dot_dimension_numbers<[1], [0], [0], [1], [0, 0, 1, 1], [], []>} : vector<8x256xbf16>, vector<256x128xbf16>, vector<8x128xf32> -> vector<8x128xf32>
    %c0_9 = arith.constant 0 : index
    %c0_10 = arith.constant 0 : index
    %11 = vector.load %arg5[%c0_9, %c0_10] : memref<1x128xf32, #tpu.memory_space<vmem>>, vector<1x128xf32>
    %12 = vector.broadcast %11 : vector<1x128xf32> to vector<8x128xf32>
    %13 = arith.addf %10, %12 : vector<8x128xf32>
    %14 = math.tanh %13 : vector<8x128xf32>
    %c0_11 = arith.constant 0 : index
    %c0_12 = arith.constant 0 : index
    %15 = vector.load %arg6[%c0_11, %c0_12] : memref<8x128xf32, #tpu.memory_space<vmem>>, vector<8x128xf32>
    tpu.vector_store %arg6[%c0_11, %c0_12], %14 {strides = array<i32>} : memref<8x128xf32, #tpu.memory_space<vmem>>, vector<8x128xf32>,
    return
  }
  func.func @transform_0(%arg0: i32) -> (i32, i32) {
    %c0_i32 = arith.constant 0 : i32
    %c0_i32_0 = arith.constant 0 : i32
    return %arg0, %c0_i32 : i32, i32
  }
  func.func @transform_1(%arg0: i32) -> (i32, i32) {
    %c0_i32 = arith.constant 0 : i32
    %c0_i32_0 = arith.constant 0 : i32
    %c0_i32_1 = arith.constant 0 : i32
    return %c0_i32, %c0_i32_0 : i32, i32
  }
  func.func @transform_2(%arg0: i32) -> (i32, i32) {
    %c0_i32 = arith.constant 0 : i32
    %c0_i32_0 = arith.constant 0 : i32
    %c0_i32_1 = arith.constant 0 : i32
    return %c0_i32, %c0_i32_0 : i32, i32
  }
  func.func @transform_3(%arg0: i32) -> (i32, i32) {
    %c0_i32 = arith.constant 0 : i32
    %c0_i32_0 = arith.constant 0 : i32
    %c0_i32_1 = arith.constant 0 : i32
    return %c0_i32, %c0_i32_0 : i32, i32
  }
  func.func @transform_4(%arg0: i32) -> (i32, i32) {
    %c0_i32 = arith.constant 0 : i32
    %c0_i32_0 = arith.constant 0 : i32
    %c0_i32_1 = arith.constant 0 : i32
    return %c0_i32, %c0_i32_0 : i32, i32
  }
  func.func @transform_5(%arg0: i32) -> (i32, i32) {
    %c0_i32 = arith.constant 0 : i32
    %c0_i32_0 = arith.constant 0 : i32
    return %arg0, %c0_i32 : i32, i32
  }
}

</mosaic_0001>

<llo_original>
// kernel: tpu_custom_call.1
$region0: #{tpu_custom_call.1}
  #allocation0 [shape = 'u32[]', space=smem, size = 0x4, offset = 0x4, fixed_abs, tag = 'smem constant byte address 0x4 - core index']
  #allocation1 [shape = 'u32[144,128]{1,0:T(1,128)}', space=vmem, size = 0x12000, scoped, tag = 'internal scratch']
  %s0 = inlined_call_operand.hbm [shape: bf16[8,9], index: 0, kind: input, shape index: {}]
  %s1 = inlined_call_operand.hbm [shape: bf16[9,256], index: 1, kind: input, shape index: {}]
  %s2 = inlined_call_operand.vmem [shape: f32[1,256], index: 2, kind: input, shape index: {}]
  %s3 = inlined_call_operand.hbm [shape: bf16[256,128], index: 3, kind: input, shape index: {}]
  %s4 = inlined_call_operand.vmem [shape: f32[1,128], index: 4, kind: input, shape index: {}]
  %s5 = inlined_call_operand.hbm [shape: f32[8,128], index: 5, kind: output, shape index: {}]
  %s6 = sld [smem:[#allocation0]]
  $region42: #{tpu_custom_call.1} parent=0
    _
  %s8 = ssub.s32 1, %s6
  %s9 = scalar_select 0, %s8, %s6
  $region1: #{tpu_custom_call.1} parent=0
    #allocation2 [shape = 'u8[2048]{0}', space=vmem, size = 0x800, scoped, tag = 'input window, operand 0, single buffered']
    #allocation3 [shape = 's32[1]{0}', space=sflag, size = 0x4, scoped, tag = 'scoped memory for tpu_custom_call.1']
    #allocation4 [shape = 's32[1]{0}', space=sflag, size = 0x4, scoped, tag = 'scoped memory for tpu_custom_call.1']
    #allocation5 [shape = 'u8[8192]{0}', space=vmem, size = 0x2000, scoped, tag = 'input window, operand 1, single buffered']
    #allocation6 [shape = 's32[1]{0}', space=sflag, size = 0x4, scoped, tag = 'scoped memory for tpu_custom_call.1']
    #allocation7 [shape = 'u8[65536]{0}', space=vmem, size = 0x10000, scoped, tag = 'input window, operand 3, single buffered']
    #allocation8 [shape = 'u8[4096]{0}', space=vmem, size = 0x1000, scoped, tag = 'output window, operand 0, single buffered']
    %10 = vsyncpa [#allocation3], 0
    %11 = vsyncpa [#allocation6], 0
    %12 = vsyncpa [#allocation4], 0
    // Predicated region
    $region2: #{tpu_custom_call.1} parent=1 // pred_check
      _
    $region3: #{tpu_custom_call.1} parent=1 // pred_check_branch
      %14 = sbr.rel (0) target = $region5
    $region4: #{tpu_custom_call.1} parent=1 // pred_region
      %s16 = ssub.s32 64, 64
      %17 = vsyncadd [#allocation3], %s16
      %s19 = sshll.u32 [#allocation2], 4
      %s20 = int_to_ptr.vmem [resolvable:$true] %s19
      %22 = dma.hbm_to_vmem [thread:$0]  %s0, 64, %s20, [#allocation3]
    $region5: #{tpu_custom_call.1} parent=1 // pred_fallthru
      _
    // Predicated region
    $region6: #{tpu_custom_call.1} parent=1 // pred_check
      _
    $region7: #{tpu_custom_call.1} parent=1 // pred_check_branch
      %24 = sbr.rel (0) target = $region9
    $region8: #{tpu_custom_call.1} parent=1 // pred_region
      %s26 = ssub.s32 256, 256
      %27 = vsyncadd [#allocation6], %s26
      %s28 = sshll.u32 [#allocation5], 4
      %s29 = int_to_ptr.vmem [resolvable:$true] %s28
      %34 = dma.hbm_to_vmem [thread:$0]  %s1, 256, %s29, [#allocation6], 128, 128, 8
    $region9: #{tpu_custom_call.1} parent=1 // pred_fallthru
      _
    // Predicated region
    $region10: #{tpu_custom_call.1} parent=1 // pred_check
      _
    $region11: #{tpu_custom_call.1} parent=1 // pred_check_branch
      %36 = sbr.rel (0) target = $region13
    $region12: #{tpu_custom_call.1} parent=1 // pred_region
      _
    $region13: #{tpu_custom_call.1} parent=1 // pred_fallthru
      _
    // Predicated region
    $region14: #{tpu_custom_call.1} parent=1 // pred_check
      _
    $region15: #{tpu_custom_call.1} parent=1 // pred_check_branch
      %38 = sbr.rel (0) target = $region17
    $region16: #{tpu_custom_call.1} parent=1 // pred_region
      %s40 = ssub.s32 2048, 2048
      %41 = vsyncadd [#allocation6], %s40
      %s42 = sshll.u32 [#allocation7], 4
      %s43 = int_to_ptr.vmem [resolvable:$true] %s42
      %48 = dma.hbm_to_vmem [thread:$0]  %s3, 2048, %s43, [#allocation6], 64, 64, 4
    $region17: #{tpu_custom_call.1} parent=1 // pred_fallthru
      _
    // Predicated region
    $region18: #{tpu_custom_call.1} parent=1 // pred_check
      _
    $region19: #{tpu_custom_call.1} parent=1 // pred_check_branch
      %50 = sbr.rel (0) target = $region21
    $region20: #{tpu_custom_call.1} parent=1 // pred_region
      _
    $region21: #{tpu_custom_call.1} parent=1 // pred_fallthru
      _
    // Predicated region
    $region22: #{tpu_custom_call.1} parent=1 // pred_check
      _
    $region23: #{tpu_custom_call.1} parent=1 // pred_check_branch
      %52 = sbr.rel (0) target = $region25
    $region24: #{tpu_custom_call.1} parent=1 // pred_region
      %53 = dma.done [#allocation3], 64
    $region25: #{tpu_custom_call.1} parent=1 // pred_fallthru
      _
    // Predicated region
    $region26: #{tpu_custom_call.1} parent=1 // pred_check
      _
    $region27: #{tpu_custom_call.1} parent=1 // pred_check_branch
      %55 = sbr.rel (0) target = $region29
    $region28: #{tpu_custom_call.1} parent=1 // pred_region
      %56 = dma.done [#allocation6], 256
    $region29: #{tpu_custom_call.1} parent=1 // pred_fallthru
      _
    // Predicated region
    $region30: #{tpu_custom_call.1} parent=1 // pred_check
      _
    $region31: #{tpu_custom_call.1} parent=1 // pred_check_branch
      %58 = sbr.rel (0) target = $region33
    $region32: #{tpu_custom_call.1} parent=1 // pred_region
      %59 = dma.done [#allocation6], 2048
    $region33: #{tpu_custom_call.1} parent=1 // pred_fallthru
      _
    %v61 = vld [vmem:[#allocation2] sm:$0xf]
    %v62 = vld [vmem:[#allocation5] sm:$0xff]
    %v63 = vld [vmem:[#allocation5 + $0x8] sm:$0x11]
    %v64 = vld [vmem:[%s2] sm:$0x3]
    %v66 = vlaneseq
    %v67 = vshrl.u32 %v66, 7
    %v68 = vsub.s32 0, %v67
    %v69 = vrot.slane %v64, %v68
    %v70 = vlaneseq
    %v71 = vshrl.u32 %v70, 7
    %v72 = vsub.s32 1, %v71
    %v73 = vrot.slane %v64, %v72
    %v78 = vunpack.c.l.b16 %v62
    %v79 = vunpack.c.h.b16 %v62
    %v80 = vunpack.c.l.b16 %v63
    %v81 = vunpack.c.h.b16 %v63
    %v82 = vpack.c.b16 %v80, %v78
    %v83 = vpack.c.b16 %v81, %v79
    %vm84 = vcmask 72704
    %v86 = vsel %vm84, %v61, 0
    %vm88 = vcmask 1043456
    %vm89 = vcmask 1044480
    %v90 = vsel %vm88, 4294967295, 65535
    %v91 = vsel %vm89, %v90, 0
    %v93 = vand.u32 %v82, %v91
    %v96 = vand.u32 %v83, %v91
    %98 = vmatprep.subr.bf16.mxu0 %v96
    %99 = vmatpush1.bf16.msra.mxu0 %v93
    %100 = vmatprep.subr.bf16.mxu0 0
    %101 = vmatpush1.bf16.msra.mxu0 0
    %102 = vmatprep.subr.bf16.mxu0 0
    %103 = vmatpush1.bf16.msra.mxu0 0
    %104 = vmatprep.subr.bf16.mxu0 0
    %105 = vmatpush1.bf16.msra.mxu0 0
    %106 = vmatprep.subr.bf16.mxu0 0
    %107 = vmatpush1.bf16.msra.mxu0 0
    %108 = vmatprep.subr.bf16.mxu0 0
    %109 = vmatpush1.bf16.msra.mxu0 0
    %110 = vmatprep.subr.bf16.mxu0 0
    %111 = vmatpush1.bf16.msra.mxu0 0
    %112 = vmatprep.subr.bf16.mxu0 0
    %113 = vmatpush1.bf16.msra.mxu0 0
    %114 = vmatprep.subr.bf16.mxu0 0
    %115 = vmatpush1.bf16.msra.mxu0 0
    %116 = vmatprep.subr.bf16.mxu0 0
    %117 = vmatpush1.bf16.msra.mxu0 0
    %118 = vmatprep.subr.bf16.mxu0 0
    %119 = vmatpush1.bf16.msra.mxu0 0
    %120 = vmatprep.subr.bf16.mxu0 0
    %121 = vmatpush1.bf16.msra.mxu0 0
    %122 = vmatprep.subr.bf16.mxu0 0
    %123 = vmatpush1.bf16.msra.mxu0 0
    %124 = vmatprep.subr.bf16.mxu0 0
    %125 = vmatpush1.bf16.msra.mxu0 0
    %126 = vmatprep.subr.bf16.mxu0 0
    %127 = vmatpush1.bf16.msra.mxu0 0
    %128 = vmatprep.subr.bf16.mxu0 0
    %129 = vmatpush1.bf16.msra.mxu0 0
    %130 = vmatprep.mubr.bf16.mxu0 0
    %131 = vmatmul.mubr.bf16.gmra.mrb[0].mxu0 %v86
    %v132 = vpop.f32.mrb[0].mxu0
    %v133 = vadd.f32 %v69, %v132
    %v134 = vpop.f32.mrb[0].mxu0
    %v135 = vadd.f32 %v73, %v134
    %v136 = vpop.f32.mrb[0].mxu0
    %v137 = vpop.f32.mrb[0].mxu0
    %138 = vdwg.mxu0
    %v139 = vmax.f32 %v133, 0.0
    %v140 = vmax.f32 %v135, 0.0
    %v141 = vpack.c.bf16 %v139, %v139
    %v142 = vpack.c.bf16 %v140, %v140
    %v143 = vld [vmem:[#allocation7] sm:$0xf]
    %v144 = vld [vmem:[#allocation7 + $0x4] sm:$0xf]
    %v145 = vld [vmem:[#allocation7 + $0x8] sm:$0xf]
    %v146 = vld [vmem:[#allocation7 + $0xc] sm:$0xf]
    %v147 = vld [vmem:[#allocation7 + $0x10] sm:$0xf]
    %v148 = vld [vmem:[#allocation7 + $0x14] sm:$0xf]
    %v149 = vld [vmem:[#allocation7 + $0x18] sm:$0xf]
    %v150 = vld [vmem:[#allocation7 + $0x1c] sm:$0xf]
    %v151 = vld [vmem:[#allocation7 + $0x20] sm:$0xf]
    %v152 = vld [vmem:[#allocation7 + $0x24] sm:$0xf]
    %v153 = vld [vmem:[#allocation7 + $0x28] sm:$0xf]
    %v154 = vld [vmem:[#allocation7 + $0x2c] sm:$0xf]
    %v155 = vld [vmem:[#allocation7 + $0x30] sm:$0xf]
    %v156 = vld [vmem:[#allocation7 + $0x34] sm:$0xf]
    %v157 = vld [vmem:[#allocation7 + $0x38] sm:$0xf]
    %v158 = vld [vmem:[#allocation7 + $0x3c] sm:$0xf]
    %v159 = vld [vmem:[#allocation7 + $0x40] sm:$0xf]
    %v160 = vld [vmem:[#allocation7 + $0x44] sm:$0xf]
    %v161 = vld [vmem:[#allocation7 + $0x48] sm:$0xf]
    %v162 = vld [vmem:[#allocation7 + $0x4c] sm:$0xf]
    %v163 = vld [vmem:[#allocation7 + $0x50] sm:$0xf]
    %v164 = vld [vmem:[#allocation7 + $0x54] sm:$0xf]
    %v165 = vld [vmem:[#allocation7 + $0x58] sm:$0xf]
    %v166 = vld [vmem:[#allocation7 + $0x5c] sm:$0xf]
    %v167 = vld [vmem:[#allocation7 + $0x60] sm:$0xf]
    %v168 = vld [vmem:[#allocation7 + $0x64] sm:$0xf]
    %v169 = vld [vmem:[#allocation7 + $0x68] sm:$0xf]
    %v170 = vld [vmem:[#allocation7 + $0x6c] sm:$0xf]
    %v171 = vld [vmem:[#allocation7 + $0x70] sm:$0xf]
    %v172 = vld [vmem:[#allocation7 + $0x74] sm:$0xf]
    %v173 = vld [vmem:[#allocation7 + $0x78] sm:$0xf]
    %v174 = vld [vmem:[#allocation7 + $0x7c] sm:$0xf]
    %v175 = vld [vmem:[%s4] sm:$0x1]
    %v177 = vlaneseq
    %v178 = vshrl.u32 %v177, 7
    %v179 = vsub.s32 0, %v178
    %v180 = vrot.slane %v175, %v179
    %v214 = vunpack.c.l.b16 %v143
    %v215 = vunpack.c.l.b16 %v144
    %v216 = vunpack.c.l.b16 %v145
    %v217 = vunpack.c.l.b16 %v146
    %v218 = vunpack.c.l.b16 %v147
    %v219 = vunpack.c.l.b16 %v148
    %v220 = vunpack.c.l.b16 %v149
    %v221 = vunpack.c.l.b16 %v150
    %v222 = vunpack.c.l.b16 %v151
    %v223 = vunpack.c.l.b16 %v152
    %v224 = vunpack.c.l.b16 %v153
    %v225 = vunpack.c.l.b16 %v154
    %v226 = vunpack.c.l.b16 %v155
    %v227 = vunpack.c.l.b16 %v156
    %v228 = vunpack.c.l.b16 %v157
    %v229 = vunpack.c.l.b16 %v158
    %v230 = vunpack.c.l.b16 %v159
    %v231 = vunpack.c.l.b16 %v160
    %v232 = vunpack.c.l.b16 %v161
    %v233 = vunpack.c.l.b16 %v162
    %v234 = vunpack.c.l.b16 %v163
    %v235 = vunpack.c.l.b16 %v164
    %v236 = vunpack.c.l.b16 %v165
    %v237 = vunpack.c.l.b16 %v166
    %v238 = vunpack.c.l.b16 %v167
    %v239 = vunpack.c.l.b16 %v168
    %v240 = vunpack.c.l.b16 %v169
    %v241 = vunpack.c.l.b16 %v170
    %v242 = vunpack.c.l.b16 %v171
    %v243 = vunpack.c.l.b16 %v172
    %v244 = vunpack.c.l.b16 %v173
    %v245 = vunpack.c.l.b16 %v174
    %v246 = vpack.c.b16 %v215, %v214
    %v247 = vpack.c.b16 %v217, %v216
    %v248 = vpack.c.b16 %v219, %v218
    %v249 = vpack.c.b16 %v221, %v220
    %v250 = vpack.c.b16 %v223, %v222
    %v251 = vpack.c.b16 %v225, %v224
    %v252 = vpack.c.b16 %v227, %v226
    %v253 = vpack.c.b16 %v229, %v228
    %v254 = vpack.c.b16 %v231, %v230
    %v255 = vpack.c.b16 %v233, %v232
    %v256 = vpack.c.b16 %v235, %v234
    %v257 = vpack.c.b16 %v237, %v236
    %v258 = vpack.c.b16 %v239, %v238
    %v259 = vpack.c.b16 %v241, %v240
    %v260 = vpack.c.b16 %v243, %v242
    %v261 = vpack.c.b16 %v245, %v244
    %278 = vmatprep.subr.bf16.mxu0 0
    %279 = vmatpush1.bf16.msra.mxu0 %v246
    %280 = vmatprep.subr.bf16.mxu0 0
    %281 = vmatpush1.bf16.msra.mxu0 %v247
    %282 = vmatprep.subr.bf16.mxu0 0
    %283 = vmatpush1.bf16.msra.mxu0 %v248
    %284 = vmatprep.subr.bf16.mxu0 0
    %285 = vmatpush1.bf16.msra.mxu0 %v249
    %286 = vmatprep.subr.bf16.mxu0 0
    %287 = vmatpush1.bf16.msra.mxu0 %v250
    %288 = vmatprep.subr.bf16.mxu0 0
    %289 = vmatpush1.bf16.msra.mxu0 %v251
    %290 = vmatprep.subr.bf16.mxu0 0
    %291 = vmatpush1.bf16.msra.mxu0 %v252
    %292 = vmatprep.subr.bf16.mxu0 0
    %293 = vmatpush1.bf16.msra.mxu0 %v253
    %294 = vmatprep.subr.bf16.mxu0 0
    %295 = vmatpush1.bf16.msra.mxu0 %v254
    %296 = vmatprep.subr.bf16.mxu0 0
    %297 = vmatpush1.bf16.msra.mxu0 %v255
    %298 = vmatprep.subr.bf16.mxu0 0
    %299 = vmatpush1.bf16.msra.mxu0 %v256
    %300 = vmatprep.subr.bf16.mxu0 0
    %301 = vmatpush1.bf16.msra.mxu0 %v257
    %302 = vmatprep.subr.bf16.mxu0 0
    %303 = vmatpush1.bf16.msra.mxu0 %v258
    %304 = vmatprep.subr.bf16.mxu0 0
    %305 = vmatpush1.bf16.msra.mxu0 %v259
    %306 = vmatprep.subr.bf16.mxu0 0
    %307 = vmatpush1.bf16.msra.mxu0 %v260
    %308 = vmatprep.subr.bf16.mxu0 0
    %309 = vmatpush1.bf16.msra.mxu0 %v261
    %310 = vmatprep.mubr.bf16.mxu0 %v142
    %311 = vmatmul.mubr.bf16.gmra.mrb[0].mxu0 %v141
    %v312 = vpop.f32.mrb[0].mxu0
    %v313 = vadd.f32 %v180, %v312
    %v314 = vpop.f32.mrb[0].mxu0
    %v315 = vpop.f32.mrb[0].mxu0
    %v316 = vpop.f32.mrb[0].mxu0
    %317 = vdwg.mxu0
    %v318 = vtanh.pop %v313
    %319 = vst [vmem:[#allocation8] sm:$0xff] %v318
    // Predicated region
    $region34: #{tpu_custom_call.1} parent=1 // pred_check
      _
    $region35: #{tpu_custom_call.1} parent=1 // pred_check_branch
      %321 = sbr.rel (0) target = $region37
    $region36: #{tpu_custom_call.1} parent=1 // pred_region
      %s323 = ssub.s32 128, 128
      %324 = vsyncadd [#allocation4], %s323
      %s326 = sshll.u32 [#allocation8], 4
      %s327 = int_to_ptr.vmem [resolvable:$true] %s326
      %329 = dma.vmem_to_hbm [thread:$0]  %s327, 128, %s5, [#allocation4]
    $region37: #{tpu_custom_call.1} parent=1 // pred_fallthru
      _
    // Predicated region
    $region38: #{tpu_custom_call.1} parent=1 // pred_check
      _
    $region39: #{tpu_custom_call.1} parent=1 // pred_check_branch
      %331 = sbr.rel (0) target = $region41
    $region40: #{tpu_custom_call.1} parent=1 // pred_region
      %332 = dma.done [#allocation4], 128
    $region41: #{tpu_custom_call.1} parent=1 // pred_fallthru
      _
    %333 = vsyncpa [#allocation3], 1
    %334 = vsyncpa [#allocation6], 1
    %335 = vsyncpa [#allocation4], 1

</llo_original>
